<compile_context>
chip_gen: v6e
topology: v6e:2x2x1
jax: 0.10.0
libtpu: 0.0.40
codegen_flags: <defaults>
</compile_context>

<pallas_src>
import jax
import jax.numpy as jnp
from jax.experimental import pallas as pl
from jax.experimental.pallas import tpu as pltpu

IN_F = 2        # input features
HID_F = 10      # hidden features
OUT_F = 1       # output features

HID_PAD = 16    # hidden padded to a sublane multiple (10 -> 16)
LANE = 128      # batch (lane axis) padding granularity
TB_MAX = 8192   # max batch rows (lanes) per grid step


def _round_up(n, m):
    return ((n + m - 1) // m) * m


def _mlp_kernel(x_ref, w1_ref, b1_ref, w2_ref, b2_ref, o_ref):
    x = x_ref[...]                       # (2, tb)   batch on lanes
    w1 = w1_ref[...]                     # (16, 2)   hidden on sublanes
    # Layer 1 (K=2): two broadcast multiply-adds + bias -> (16, tb), then ReLU.
    h = w1[:, 0:1] * x[0:1, :] + w1[:, 1:2] * x[1:2, :] + b1_ref[...]
    h = jnp.maximum(h, 0.0)              # padded hidden sublanes stay exactly 0
    # Layer 2 (N=1): elementwise multiply + 16-sublane reduction, then bias.
    y = jnp.sum(h * w2_ref[...], axis=0, keepdims=True) + b2_ref[0]   # (1, tb)
    # Numerically-stable sigmoid: one exp (EUP), exact divides (tiny, (1, tb)).
    z = jnp.exp(-jnp.abs(y))
    o_ref[...] = jnp.where(y >= 0.0, 1.0 / (1.0 + z), z / (1.0 + z))


@jax.jit
def basic_net_forward(x, w1p, b1p, w2p, b2p):
    """x: (B, 2) f32. Padded params: w1p (16,2), b1p (16,1), w2p (16,1), b2p (1,)."""
    B = x.shape[0]
    tb = min(TB_MAX, _round_up(B, LANE))
    Bp = _round_up(B, tb)
    # Transpose so batch sits on the lane axis; pad batch up to the tile size.
    xt = jnp.pad(x.astype(jnp.float32).T, ((0, 0), (0, Bp - B)))      # (2, Bp)

    out = pl.pallas_call(
        _mlp_kernel,
        out_shape=jax.ShapeDtypeStruct((1, Bp), jnp.float32),         # lane-dense
        grid=(Bp // tb,),
        in_specs=[
            pl.BlockSpec((IN_F, tb), lambda i: (0, i)),               # x: tiled over lanes
            pl.BlockSpec((HID_PAD, IN_F), lambda i: (0, 0)),          # w1: resident
            pl.BlockSpec((HID_PAD, 1), lambda i: (0, 0)),             # b1: resident
            pl.BlockSpec((HID_PAD, 1), lambda i: (0, 0)),             # w2: resident
            pl.BlockSpec(memory_space=pltpu.MemorySpace.SMEM),        # b2: SMEM scalar
        ],
        out_specs=pl.BlockSpec((1, tb), lambda i: (0, i)),
        compiler_params=pltpu.CompilerParams(
            dimension_semantics=("parallel",),   # batch tiles shard across TCs (v7x)
            vmem_limit_bytes=32 * 1024 * 1024,
        ),
    )(xt, w1p, b1p, w2p, b2p)

    return out[0, :B].reshape(B, OUT_F)


def prepare_params(w1, b1, w2, b2):
    """Pad the tiny params ONCE for the transposed (hidden-on-sublanes) layout.

    Math layout is 'x @ W + b' (transpose of PyTorch's (out, in) storage; same
    result as F.linear): w1 (2, 10), b1 (10,), w2 (10, 1), b2 (1,).
    """
    w1p = jnp.zeros((HID_PAD, IN_F), jnp.float32).at[:HID_F, :].set(w1.T)   # (16, 2)
    b1p = jnp.zeros((HID_PAD, 1), jnp.float32).at[:HID_F, 0].set(b1)        # (16, 1)
    w2p = jnp.zeros((HID_PAD, 1), jnp.float32).at[:HID_F, 0].set(w2[:, 0])  # (16, 1)
    b2p = jnp.asarray(b2, jnp.float32).reshape(1,)                          # (1,) SMEM
    return w1p, b1p, w2p, b2p


def init_params(key):
    """Deterministic init mimicking nn.Linear's U(-1/sqrt(fan_in), 1/sqrt(fan_in))."""
    k1, k2, k3, k4 = jax.random.split(key, 4)
    bound1 = 1.0 / jnp.sqrt(jnp.float32(IN_F))
    bound2 = 1.0 / jnp.sqrt(jnp.float32(HID_F))
    w1 = jax.random.uniform(k1, (IN_F, HID_F), jnp.float32, -bound1, bound1)
    b1 = jax.random.uniform(k2, (HID_F,), jnp.float32, -bound1, bound1)
    w2 = jax.random.uniform(k3, (HID_F, OUT_F), jnp.float32, -bound2, bound2)
    b2 = jax.random.uniform(k4, (OUT_F,), jnp.float32, -bound2, bound2)
    return w1, b1, w2, b2


def _reference(x, w1, b1, w2, b2):
    return jax.nn.sigmoid(jnp.maximum(x @ w1 + b1, 0.0) @ w2 + b2)


if __name__ == "__main__":
    key = jax.random.PRNGKey(0)
    k_params, k_x1, k_x2 = jax.random.split(key, 3)
    w1, b1, w2, b2 = init_params(k_params)
    padded = prepare_params(w1, b1, w2, b2)

    # Small batch (single grid step, heavy lane padding path).
    x_small = jax.random.normal(k_x1, (8, IN_F), jnp.float32)
    out_small = jax.block_until_ready(basic_net_forward(x_small, *padded))
    assert out_small.shape == (8, OUT_F)
    assert jnp.allclose(out_small, _reference(x_small, w1, b1, w2, b2),
                        atol=1e-5, rtol=1e-5)

    # Ragged batch (non-multiple of 128 lanes; exercises padding + slice-back).
    x_big = jax.random.normal(k_x2, (1037, IN_F), jnp.float32)
    out_big = jax.block_until_ready(basic_net_forward(x_big, *padded))
    assert out_big.shape == (1037, OUT_F)
    assert jnp.allclose(out_big, _reference(x_big, w1, b1, w2, b2),
                        atol=1e-5, rtol=1e-5)

    print("KERNEL_OK")
</pallas_src>

<mosaic_0001>
module attributes {stable_mosaic.version = 11 : i64} {
  func.func @_mlp_kernel(%arg0: i32, %arg1: memref<2x128xf32, #tpu.memory_space<vmem>>, %arg2: memref<16x2xf32, #tpu.memory_space<vmem>>, %arg3: memref<16x1xf32, #tpu.memory_space<vmem>>, %arg4: memref<16x1xf32, #tpu.memory_space<vmem>>, %arg5: memref<1xf32, #tpu.memory_space<smem>>, %arg6: memref<1x128xf32, #tpu.memory_space<vmem>>) attributes {dimension_semantics = [#tpu.dimension_semantics<parallel>], iteration_bounds = array<i64: 1>, scalar_prefetch = 0 : i64, scratch_operands = 0 : i64, tpu.core_type = #tpu.core_type<tc>, window_params = [{transform_indices = @transform_0, window_bounds = array<i64: 2, 128>}, {pipeline_mode = #tpu.pipeline_mode<synchronous>, transform_indices = @transform_1, window_bounds = array<i64: 16, 2>}, {pipeline_mode = #tpu.pipeline_mode<synchronous>, transform_indices = @transform_2, window_bounds = array<i64: 16, 1>}, {pipeline_mode = #tpu.pipeline_mode<synchronous>, transform_indices = @transform_3, window_bounds = array<i64: 16, 1>}, {transform_indices = @transform_4, window_bounds = array<i64: 1>}, {transform_indices = @transform_5, window_bounds = array<i64: 1, 128>}]} {
    %c0 = arith.constant 0 : index
    %c0_0 = arith.constant 0 : index
    %0 = vector.load %arg1[%c0, %c0_0] : memref<2x128xf32, #tpu.memory_space<vmem>>, vector<2x128xf32>
    %c0_1 = arith.constant 0 : index
    %c0_2 = arith.constant 0 : index
    %1 = vector.load %arg2[%c0_1, %c0_2] : memref<16x2xf32, #tpu.memory_space<vmem>>, vector<16x2xf32>
    %2 = vector.extract_strided_slice %1 {offsets = [0, 0], sizes = [16, 1], strides = [1, 1]} : vector<16x2xf32> to vector<16x1xf32>
    %3 = vector.extract_strided_slice %0 {offsets = [0, 0], sizes = [1, 128], strides = [1, 1]} : vector<2x128xf32> to vector<1x128xf32>
    %4 = vector.broadcast %2 : vector<16x1xf32> to vector<16x128xf32>
    %5 = vector.broadcast %3 : vector<1x128xf32> to vector<16x128xf32>
    %6 = arith.mulf %4, %5 : vector<16x128xf32>
    %7 = vector.extract_strided_slice %1 {offsets = [0, 1], sizes = [16, 1], strides = [1, 1]} : vector<16x2xf32> to vector<16x1xf32>
    %8 = vector.extract_strided_slice %0 {offsets = [1, 0], sizes = [1, 128], strides = [1, 1]} : vector<2x128xf32> to vector<1x128xf32>
    %9 = vector.broadcast %7 : vector<16x1xf32> to vector<16x128xf32>
    %10 = vector.broadcast %8 : vector<1x128xf32> to vector<16x128xf32>
    %11 = arith.mulf %9, %10 : vector<16x128xf32>
    %12 = arith.addf %6, %11 : vector<16x128xf32>
    %c0_3 = arith.constant 0 : index
    %c0_4 = arith.constant 0 : index
    %13 = vector.load %arg3[%c0_3, %c0_4] : memref<16x1xf32, #tpu.memory_space<vmem>>, vector<16x1xf32>
    %14 = vector.broadcast %13 : vector<16x1xf32> to vector<16x128xf32>
    %15 = arith.addf %12, %14 : vector<16x128xf32>
    %cst = arith.constant 0.000000e+00 : f32
    %16 = vector.broadcast %cst : f32 to vector<16x128xf32>
    %17 = arith.maximumf %15, %16 : vector<16x128xf32>
    %c0_5 = arith.constant 0 : index
    %c0_6 = arith.constant 0 : index
    %18 = vector.load %arg4[%c0_5, %c0_6] : memref<16x1xf32, #tpu.memory_space<vmem>>, vector<16x1xf32>
    %19 = vector.broadcast %18 : vector<16x1xf32> to vector<16x128xf32>
    %20 = arith.mulf %17, %19 : vector<16x128xf32>
    %cst_7 = arith.constant dense<0.000000e+00> : vector<128xf32>
    %21 = vector.multi_reduction <add>, %20, %cst_7 [0] : vector<16x128xf32> to vector<128xf32>
    %22 = vector.shape_cast %21 : vector<128xf32> to vector<1x128xf32>
    %c0_8 = arith.constant 0 : index
    %23 = memref.load %arg5[%c0_8] : memref<1xf32, #tpu.memory_space<smem>>
    %24 = vector.broadcast %23 : f32 to vector<1x128xf32>
    %25 = arith.addf %22, %24 : vector<1x128xf32>
    %26 = math.absf %25 : vector<1x128xf32>
    %cst_9 = arith.constant 0.000000e+00 : f32
    %27 = vector.broadcast %cst_9 : f32 to vector<1x128xf32>
    %28 = arith.subf %27, %26 : vector<1x128xf32>
    %29 = math.exp %28 : vector<1x128xf32>
    %cst_10 = arith.constant 0.000000e+00 : f32
    %30 = vector.broadcast %cst_10 : f32 to vector<1x128xf32>
    %31 = arith.cmpf oge, %25, %30 : vector<1x128xf32>
    %cst_11 = arith.constant 1.000000e+00 : f32
    %32 = vector.broadcast %cst_11 : f32 to vector<1x128xf32>
    %33 = arith.addf %32, %29 : vector<1x128xf32>
    %cst_12 = arith.constant 1.000000e+00 : f32
    %34 = vector.broadcast %cst_12 : f32 to vector<1x128xf32>
    %35 = arith.divf %34, %33 : vector<1x128xf32>
    %cst_13 = arith.constant 1.000000e+00 : f32
    %36 = vector.broadcast %cst_13 : f32 to vector<1x128xf32>
    %37 = arith.addf %36, %29 : vector<1x128xf32>
    %38 = arith.divf %29, %37 : vector<1x128xf32>
    %39 = arith.select %31, %35, %38 : vector<1x128xi1>, vector<1x128xf32>
    %c0_14 = arith.constant 0 : index
    %c0_15 = arith.constant 0 : index
    %40 = vector.load %arg6[%c0_14, %c0_15] : memref<1x128xf32, #tpu.memory_space<vmem>>, vector<1x128xf32>
    tpu.vector_store %arg6[%c0_14, %c0_15], %39 {strides = array<i32>} : memref<1x128xf32, #tpu.memory_space<vmem>>, vector<1x128xf32>,
    return
  }
  func.func @transform_0(%arg0: i32) -> (i32, i32) {
    %c0_i32 = arith.constant 0 : i32
    %c0_i32_0 = arith.constant 0 : i32
    return %c0_i32, %arg0 : i32, i32
  }
  func.func @transform_1(%arg0: i32) -> (i32, i32) {
    %c0_i32 = arith.constant 0 : i32
    %c0_i32_0 = arith.constant 0 : i32
    %c0_i32_1 = arith.constant 0 : i32
    return %c0_i32, %c0_i32_0 : i32, i32
  }
  func.func @transform_2(%arg0: i32) -> (i32, i32) {
    %c0_i32 = arith.constant 0 : i32
    %c0_i32_0 = arith.constant 0 : i32
    %c0_i32_1 = arith.constant 0 : i32
    return %c0_i32, %c0_i32_0 : i32, i32
  }
  func.func @transform_3(%arg0: i32) -> (i32, i32) {
    %c0_i32 = arith.constant 0 : i32
    %c0_i32_0 = arith.constant 0 : i32
    %c0_i32_1 = arith.constant 0 : i32
    return %c0_i32, %c0_i32_0 : i32, i32
  }
  func.func @transform_4(%arg0: i32) -> i32 {
    %c0_i32 = arith.constant 0 : i32
    %c0_i32_0 = arith.constant 0 : i32
    return %c0_i32 : i32
  }
  func.func @transform_5(%arg0: i32) -> (i32, i32) {
    %c0_i32 = arith.constant 0 : i32
    %c0_i32_0 = arith.constant 0 : i32
    return %c0_i32, %arg0 : i32, i32
  }
}

</mosaic_0001>

<llo_original>
// kernel: basic_net_forward.1
$region0: #{basic_net_forward.1}
  #allocation0 [shape = 'u32[]', space=smem, size = 0x4, offset = 0x4, fixed_abs, tag = 'smem constant byte address 0x4 - core index']
  #allocation1 [shape = 'u32[144,128]{1,0:T(1,128)}', space=vmem, size = 0x12000, scoped, tag = 'internal scratch']
  #allocation2 [shape = 'f32[1]{0:T(128)S(6)}', space=smem, size = 0x200, scoped, tag = 'scoped memory for basic_net_forward.1']
  %s0 = inlined_call_operand.vmem [shape: f32[2,128], index: 0, kind: input, shape index: {}]
  %s1 = inlined_call_operand.vmem [shape: f32[16,2], index: 1, kind: input, shape index: {}]
  %s2 = inlined_call_operand.vmem [shape: f32[16,1], index: 2, kind: input, shape index: {}]
  %s3 = inlined_call_operand.vmem [shape: f32[16,1], index: 3, kind: input, shape index: {}]
  %s4 = inlined_call_operand.<no memory space> [shape: f32[1], index: 4, kind: input, shape index: {}]
  %s5 = inlined_call_operand.vmem [shape: f32[1,128], index: 5, kind: output, shape index: {}]
  %s6 = sld [smem:[#allocation0]]
  $region30: #{basic_net_forward.1} parent=0
    _
  %s8 = ssub.s32 1, %s6
  %s9 = scalar_select 0, %s8, %s6
  %10 = sst [smem:[#allocation2]] %s4
  // Predicated region
  $region2: #{basic_net_forward.1} parent=0 // pred_check
    _
  $region3: #{basic_net_forward.1} parent=0 // pred_check_branch
    %12 = sbr.rel (0) target = $region5
  $region4: #{basic_net_forward.1} parent=0 // pred_region
    _
  $region5: #{basic_net_forward.1} parent=0 // pred_fallthru
    _
  // Predicated region
  $region6: #{basic_net_forward.1} parent=0 // pred_check
    _
  $region7: #{basic_net_forward.1} parent=0 // pred_check_branch
    %14 = sbr.rel (0) target = $region9
  $region8: #{basic_net_forward.1} parent=0 // pred_region
    _
  $region9: #{basic_net_forward.1} parent=0 // pred_fallthru
    _
  // Predicated region
  $region10: #{basic_net_forward.1} parent=0 // pred_check
    _
  $region11: #{basic_net_forward.1} parent=0 // pred_check_branch
    %16 = sbr.rel (0) target = $region13
  $region12: #{basic_net_forward.1} parent=0 // pred_region
    _
  $region13: #{basic_net_forward.1} parent=0 // pred_fallthru
    _
  // Predicated region
  $region14: #{basic_net_forward.1} parent=0 // pred_check
    _
  $region15: #{basic_net_forward.1} parent=0 // pred_check_branch
    %18 = sbr.rel (0) target = $region17
  $region16: #{basic_net_forward.1} parent=0 // pred_region
    _
  $region17: #{basic_net_forward.1} parent=0 // pred_fallthru
    _
  // Predicated region
  $region18: #{basic_net_forward.1} parent=0 // pred_check
    _
  $region19: #{basic_net_forward.1} parent=0 // pred_check_branch
    %20 = sbr.rel (0) target = $region21
  $region20: #{basic_net_forward.1} parent=0 // pred_region
    _
  $region21: #{basic_net_forward.1} parent=0 // pred_fallthru
    _
  %v21 = vld [vmem:[%s0] sm:$0x3]
  %v22 = vld [vmem:[%s1] sm:$0xff]
  %v23 = vld [vmem:[%s1 + $0x8] sm:$0xff]
  %25 = vset.pattern.permute.xlu0 0
  %26 = vperm.xlu0 %25, %v22
  %v27 = vpop.permute.xlu0 %26
  %30 = vset.pattern.permute.xlu0 0
  %31 = vperm.xlu0 %30, %v23
  %v32 = vpop.permute.xlu0 %31
  %v34 = vlaneseq
  %v35 = vshrl.u32 %v34, 7
  %v36 = vsub.s32 0, %v35
  %v37 = vrot.slane %v21, %v36
  %v38 = vmul.f32 %v27, %v37
  %v39 = vmul.f32 %v32, %v37
  %40 = vset.pattern.permute.xlu0 1
  %41 = vperm.xlu0 %40, %v22
  %v42 = vpop.permute.xlu0 %41
  %44 = vset.pattern.permute.xlu0 1
  %45 = vperm.xlu0 %44, %v23
  %v46 = vpop.permute.xlu0 %45
  %v48 = vlaneseq
  %v49 = vshrl.u32 %v48, 7
  %v50 = vsub.s32 1, %v49
  %v51 = vrot.slane %v21, %v50
  %v52 = vmul.f32 %v42, %v51
  %v53 = vmul.f32 %v46, %v51
  %v54 = vadd.f32 %v38, %v52
  %v55 = vadd.f32 %v39, %v53
  %v56 = vld [vmem:[%s2] sm:$0xff]
  %v57 = vld [vmem:[%s2 + $0x8] sm:$0xff]
  %59 = vset.pattern.permute.xlu0 0
  %60 = vperm.xlu0 %59, %v56
  %v61 = vpop.permute.xlu0 %60
  %64 = vset.pattern.permute.xlu0 0
  %65 = vperm.xlu0 %64, %v57
  %v66 = vpop.permute.xlu0 %65
  %v68 = vadd.f32 %v54, %v61
  %v69 = vadd.f32 %v55, %v66
  %v70 = vmax.f32 %v68, 0.0
  %v71 = vmax.f32 %v69, 0.0
  %v72 = vld [vmem:[%s3] sm:$0xff]
  %v73 = vld [vmem:[%s3 + $0x8] sm:$0xff]
  %75 = vset.pattern.permute.xlu0 0
  %76 = vperm.xlu0 %75, %v72
  %v77 = vpop.permute.xlu0 %76
  %80 = vset.pattern.permute.xlu0 0
  %81 = vperm.xlu0 %80, %v73
  %v82 = vpop.permute.xlu0 %81
  %v84 = vmul.f32 %v70, %v77
  %v85 = vmul.f32 %v71, %v82
  %v86 = vadd.f32 %v84, %v85
  %v87 = vrot.slane %v86, 4
  %v88 = vadd.f32 %v86, %v87
  %v89 = vrot.slane %v88, 2
  %v90 = vadd.f32 %v88, %v89
  %v91 = vrot.slane %v90, 1
  %v92 = vadd.f32 %v90, %v91
  %s93 = sld [smem:[#allocation2]]
  %v94 = vstv %s93
  %v95 = vadd.f32 %v92, %v94
  %v96 = vand.u32 2147483647, %v95
  %v97 = vsub.f32 0.0, %v96
  %v98 = vmul.f32 %v97, 1.442695
  %v99 = vpow.pop %v98
  %vm100 = vcmp.ge.f32.partialorder %v95, 0.0
  %v101 = vadd.f32 %v99, 1.0
  %v102 = vrcp.pop %v101
  %v103 = vmul.f32 1.0, %v102
  %v104 = vmul.f32 %v99, %v102
  %v105 = vsel %vm100, %v103, %v104
  %106 = vst [vmem:[%s5] sm:$0x1] %v105
  // Predicated region
  $region22: #{basic_net_forward.1} parent=0 // pred_check
    _
  $region23: #{basic_net_forward.1} parent=0 // pred_check_branch
    %108 = sbr.rel (0) target = $region25
  $region24: #{basic_net_forward.1} parent=0 // pred_region
    _
  $region25: #{basic_net_forward.1} parent=0 // pred_fallthru
    _
  // Predicated region
  $region26: #{basic_net_forward.1} parent=0 // pred_check
    _
  $region27: #{basic_net_forward.1} parent=0 // pred_check_branch
    %110 = sbr.rel (0) target = $region29
  $region28: #{basic_net_forward.1} parent=0 // pred_region
    _
  $region29: #{basic_net_forward.1} parent=0 // pred_fallthru
    _

</llo_original>
